<compile_context>
chip_gen: v7x
topology: tpu7x:2x2x1
jax: 0.10.0
libtpu: 0.0.40
codegen_flags: <defaults>
</compile_context>

<pallas_src>
import jax
import jax.numpy as jnp
from jax.experimental import pallas as pl
from jax.experimental.pallas import tpu as pltpu


_MAX_TILE_HW = 4096            # lane-dim tile cap (multiple of 128)
_TARGET_STEP_BYTES = 8 << 20   # live blocks per grid step (x2 when double-buffered)
_VMEM_LIMIT_BYTES = 32 << 20   # raise v5e's 16 MiB scoped default; matches v6e/v7x default


def _split_cat_kernel(x_ref, cat_ref, s0_ref, s1_ref, s2_ref):
    x = x_ref[...]               # (tile_n, 3, tile_hw), lane-dense block of v1
    cat_ref[...] = x             # torch.cat(torch.split(v1,[1,1,1],1),1) == fresh copy of v1
    s0_ref[...] = x[:, 0, :]     # channel planes, written as lane-dense 2-D slabs
    s1_ref[...] = x[:, 1, :]
    s2_ref[...] = x[:, 2, :]


def _pick_tiles(n, hw, itemsize):
    """Static tile sizes for the (N, 3, H*W) view of v1."""
    # Sublane packing: 8 rows for 32-bit, 16 for bf16/fp16, 32 for int8/fp8.
    sub = {1: 32, 2: 16, 4: 8}.get(itemsize, 8)

    # Lane tile: a multiple of 128 whenever H*W allows it (ragged last block is
    # handled by Pallas with masked stores); below 128 the only legal choice is
    # the full extent.
    if hw >= 128:
        tile_hw = min(hw, _MAX_TILE_HW)
        tile_hw -= tile_hw % 128
    else:
        tile_hw = hw

    # Batch tile: fit input + cat + 3 split blocks (accounting for the 3 -> sub
    # sublane padding of the 3-D blocks in VMEM) inside the per-step budget.
    bytes_per_n = (2 * sub + 3) * tile_hw * itemsize
    budget_n = max(1, _TARGET_STEP_BYTES // bytes_per_n)
    if budget_n >= n or n <= sub:
        tile_n = n                                   # full extent: always legal
    else:
        tile_n = max(sub, (budget_n // sub) * sub)   # dtype-aware sublane multiple
        tile_n = min(tile_n, (n // sub) * sub)

    # Give the two v7x TensorCores at least two tiles to shard when it is cheap.
    if pl.cdiv(n, tile_n) * pl.cdiv(hw, tile_hw) == 1 and tile_hw % 256 == 0:
        tile_hw //= 2
    return tile_n, tile_hw


def _split_cat(v1):
    n, c, h, w = v1.shape
    hw = h * w
    itemsize = jnp.dtype(v1.dtype).itemsize
    tile_n, tile_hw = _pick_tiles(n, hw, itemsize)

    x = v1.reshape(n, c, hw)                  # metadata-only under jit
    grid = (pl.cdiv(n, tile_n), pl.cdiv(hw, tile_hw))

    cat, s0, s1, s2 = pl.pallas_call(
        _split_cat_kernel,
        out_shape=(
            jax.ShapeDtypeStruct((n, c, hw), v1.dtype),
            jax.ShapeDtypeStruct((n, hw), v1.dtype),
            jax.ShapeDtypeStruct((n, hw), v1.dtype),
            jax.ShapeDtypeStruct((n, hw), v1.dtype),
        ),
        grid=grid,
        in_specs=[pl.BlockSpec((tile_n, c, tile_hw), lambda i, j: (i, 0, j))],
        out_specs=(
            pl.BlockSpec((tile_n, c, tile_hw), lambda i, j: (i, 0, j)),
            pl.BlockSpec((tile_n, tile_hw), lambda i, j: (i, j)),
            pl.BlockSpec((tile_n, tile_hw), lambda i, j: (i, j)),
            pl.BlockSpec((tile_n, tile_hw), lambda i, j: (i, j)),
        ),
        compiler_params=pltpu.CompilerParams(
            dimension_semantics=("parallel", "parallel"),
            vmem_limit_bytes=_VMEM_LIMIT_BYTES,
        ),
    )(x)

    concatenated = cat.reshape(n, c, h, w)
    splits = tuple(s.reshape(n, 1, h, w) for s in (s0, s1, s2))
    return concatenated, splits


@jax.jit
def model_forward(v1):
    """Reproduces Model.forward(v1) -> (concatenated_tensor, (s0, s1, s2))."""
    assert v1.shape[1] == 3, "torch.split(v1, [1, 1, 1], dim=1) needs 3 channels"
    return _split_cat(v1)


if __name__ == "__main__":
    key = jax.random.PRNGKey(0)

    # Primary small-shape check consistent with split([1, 1, 1], dim=1).
    v1 = jax.random.normal(key, (2, 3, 16, 16), dtype=jnp.float32)
    concat, splits = model_forward(v1)
    jax.block_until_ready(concat)
    for s in splits:
        jax.block_until_ready(s)

    assert concat.shape == v1.shape and concat.dtype == v1.dtype
    assert jnp.array_equal(concat, v1)
    assert len(splits) == 3
    for i, s in enumerate(splits):
        assert s.shape == (2, 1, 16, 16)
        assert jnp.array_equal(s, v1[:, i:i + 1, :, :])
    assert jnp.array_equal(jnp.concatenate(splits, axis=1), v1)

    # Secondary check: multi-tile, lane-dense path (grid > 1).
    v1_big = jax.random.normal(jax.random.PRNGKey(1), (16, 3, 64, 64), jnp.float32)
    concat_b, splits_b = model_forward(v1_big)
    jax.block_until_ready(concat_b)
    assert jnp.array_equal(concat_b, v1_big)
    assert all(jnp.array_equal(s, v1_big[:, i:i + 1]) for i, s in enumerate(splits_b))

    # Tertiary check: H*W not a multiple of 128 (full-extent lane block path).
    v1_odd = jax.random.normal(jax.random.PRNGKey(2), (2, 3, 10, 10), jnp.float32)
    concat_o, splits_o = model_forward(v1_odd)
    jax.block_until_ready(concat_o)
    assert jnp.array_equal(concat_o, v1_odd)
    assert all(jnp.array_equal(s, v1_odd[:, i:i + 1]) for i, s in enumerate(splits_o))

    print("KERNEL_OK")
</pallas_src>

<mosaic_0001>
module attributes {stable_mosaic.version = 11 : i64} {
  func.func @_split_cat_kernel(%arg0: i32, %arg1: i32, %arg2: memref<2x3x128xf32, #tpu.memory_space<vmem>>, %arg3: memref<2x3x128xf32, #tpu.memory_space<vmem>>, %arg4: memref<2x128xf32, #tpu.memory_space<vmem>>, %arg5: memref<2x128xf32, #tpu.memory_space<vmem>>, %arg6: memref<2x128xf32, #tpu.memory_space<vmem>>) attributes {dimension_semantics = [#tpu.dimension_semantics<parallel>, #tpu.dimension_semantics<parallel>], iteration_bounds = array<i64: 1, 2>, scalar_prefetch = 0 : i64, scratch_operands = 0 : i64, tpu.core_type = #tpu.core_type<tc>, window_params = [{transform_indices = @transform_0, window_bounds = array<i64: 2, 3, 128>}, {transform_indices = @transform_1, window_bounds = array<i64: 2, 3, 128>}, {transform_indices = @transform_2, window_bounds = array<i64: 2, 128>}, {transform_indices = @transform_3, window_bounds = array<i64: 2, 128>}, {transform_indices = @transform_4, window_bounds = array<i64: 2, 128>}]} {
    %c0 = arith.constant 0 : index
    %c0_0 = arith.constant 0 : index
    %c0_1 = arith.constant 0 : index
    %0 = vector.load %arg2[%c0, %c0_0, %c0_1] : memref<2x3x128xf32, #tpu.memory_space<vmem>>, vector<2x3x128xf32>
    %c0_2 = arith.constant 0 : index
    %c0_3 = arith.constant 0 : index
    %c0_4 = arith.constant 0 : index
    %1 = vector.load %arg3[%c0_2, %c0_3, %c0_4] : memref<2x3x128xf32, #tpu.memory_space<vmem>>, vector<2x3x128xf32>
    tpu.vector_store %arg3[%c0_2, %c0_3, %c0_4], %0 {strides = array<i32>} : memref<2x3x128xf32, #tpu.memory_space<vmem>>, vector<2x3x128xf32>,
    %2 = vector.extract_strided_slice %0 {offsets = [0, 0, 0], sizes = [2, 1, 128], strides = [1, 1, 1]} : vector<2x3x128xf32> to vector<2x1x128xf32>
    %3 = vector.shape_cast %2 : vector<2x1x128xf32> to vector<2x128xf32>
    %c0_5 = arith.constant 0 : index
    %c0_6 = arith.constant 0 : index
    %4 = vector.load %arg4[%c0_5, %c0_6] : memref<2x128xf32, #tpu.memory_space<vmem>>, vector<2x128xf32>
    tpu.vector_store %arg4[%c0_5, %c0_6], %3 {strides = array<i32>} : memref<2x128xf32, #tpu.memory_space<vmem>>, vector<2x128xf32>,
    %5 = vector.extract_strided_slice %0 {offsets = [0, 1, 0], sizes = [2, 1, 128], strides = [1, 1, 1]} : vector<2x3x128xf32> to vector<2x1x128xf32>
    %6 = vector.shape_cast %5 : vector<2x1x128xf32> to vector<2x128xf32>
    %c0_7 = arith.constant 0 : index
    %c0_8 = arith.constant 0 : index
    %7 = vector.load %arg5[%c0_7, %c0_8] : memref<2x128xf32, #tpu.memory_space<vmem>>, vector<2x128xf32>
    tpu.vector_store %arg5[%c0_7, %c0_8], %6 {strides = array<i32>} : memref<2x128xf32, #tpu.memory_space<vmem>>, vector<2x128xf32>,
    %8 = vector.extract_strided_slice %0 {offsets = [0, 2, 0], sizes = [2, 1, 128], strides = [1, 1, 1]} : vector<2x3x128xf32> to vector<2x1x128xf32>
    %9 = vector.shape_cast %8 : vector<2x1x128xf32> to vector<2x128xf32>
    %c0_9 = arith.constant 0 : index
    %c0_10 = arith.constant 0 : index
    %10 = vector.load %arg6[%c0_9, %c0_10] : memref<2x128xf32, #tpu.memory_space<vmem>>, vector<2x128xf32>
    tpu.vector_store %arg6[%c0_9, %c0_10], %9 {strides = array<i32>} : memref<2x128xf32, #tpu.memory_space<vmem>>, vector<2x128xf32>,
    return
  }
  func.func @transform_0(%arg0: i32, %arg1: i32) -> (i32, i32, i32) {
    %c0_i32 = arith.constant 0 : i32
    %c0_i32_0 = arith.constant 0 : i32
    return %arg0, %c0_i32, %arg1 : i32, i32, i32
  }
  func.func @transform_1(%arg0: i32, %arg1: i32) -> (i32, i32, i32) {
    %c0_i32 = arith.constant 0 : i32
    %c0_i32_0 = arith.constant 0 : i32
    return %arg0, %c0_i32, %arg1 : i32, i32, i32
  }
  func.func @transform_2(%arg0: i32, %arg1: i32) -> (i32, i32) {
    %c0_i32 = arith.constant 0 : i32
    return %arg0, %arg1 : i32, i32
  }
  func.func @transform_3(%arg0: i32, %arg1: i32) -> (i32, i32) {
    %c0_i32 = arith.constant 0 : i32
    return %arg0, %arg1 : i32, i32
  }
  func.func @transform_4(%arg0: i32, %arg1: i32) -> (i32, i32) {
    %c0_i32 = arith.constant 0 : i32
    return %arg0, %arg1 : i32, i32
  }
}

</mosaic_0001>

<llo_original>
// kernel: model_forward.1
$region0: #{model_forward.1}
  #allocation0 [shape = 'u32[]', space=smem, size = 0x4, offset = 0x4, fixed_abs, tag = 'smem constant byte address 0x4 - core index']
  #allocation1 [shape = 'u32[144,128]{1,0:T(1,128)}', space=vmem, size = 0x12000, scoped, tag = 'internal scratch']
  %s0 = inlined_call_operand.vmem [shape: f32[2,3,256], index: 0, kind: input, shape index: {}]
  %s1 = inlined_call_operand.vmem [shape: f32[2,3,256], index: 1, kind: output, shape index: {0}]
  %s2 = inlined_call_operand.vmem [shape: f32[2,256], index: 2, kind: output, shape index: {1}]
  %s3 = inlined_call_operand.vmem [shape: f32[2,256], index: 3, kind: output, shape index: {2}]
  %s4 = inlined_call_operand.vmem [shape: f32[2,256], index: 4, kind: output, shape index: {3}]
  %5 = xla_tuple %s1, %s2, %s3, %s4
  %s6 = sld [smem:[#allocation0]]
  $region139: #{model_forward.1} parent=0
    _
  %s8 = ssub.s32 1, %s6
  %s9 = scalar_select 0, %s8, %s6
  $region1: #{model_forward.1} parent=0
    #allocation2 [shape = 'u8[8192]{0}', space=vmem, size = 0x2000, scoped, tag = 'input window, operand 0']
    #allocation3 [shape = 'u8[8192]{0}', space=vmem, size = 0x2000, scoped, tag = 'output window, operand 0']
    loop: start=0, step=1, limit=4
    $region2: #{model_forward.1} parent=1 // loop_pre_header
      _
    $region3: #{model_forward.1} parent=1 // loop_header
      %s11 = sphi 0, %s15
      %p12 = scmp.ge.s32.totalorder %s11, 4
      %s18 = sphi 0, %s30
      %s19 = sphi 0, %s26
      %s20 = sphi 0, %s18
      %s21 = sphi 0, %s19
      %s22 = sphi 0, %s20
      %s23 = sphi 0, %s21
      %s35 = sphi 0, %s37
      %s38 = sphi 0, %s35
      %s39 = sphi 0, %s38
      %s55 = sphi 0, %s39
      %s63 = sphi 0, %s65
      %s66 = sphi 0, %s63
      %s67 = sphi 0, %s66
      %s83 = sphi 0, %s67
      %s91 = sphi 0, %s93
      %s94 = sphi 0, %s91
      %s95 = sphi 0, %s94
      %s111 = sphi 0, %s95
      %s119 = sphi 0, %s121
      %s122 = sphi 0, %s119
      %s123 = sphi 0, %s122
      %s139 = sphi 0, %s123
      %s147 = sphi 0, %s149
      %s150 = sphi 0, %s147
      %s151 = sphi 0, %s150
      %s167 = sphi 0, %s151
    $region4: #{model_forward.1} parent=1 // loop_header_branch
      %14 = sbr.rel (%p12) target = $region8
    $region5: #{model_forward.1} parent=1 // loop_body
      %s16 = ssub.s32 %s11, 1
      %s17 = ssub.s32 %s11, 2
      %s24 = sadd.s32 1, %s19
      %p25 = scmp.ge.s32.totalorder %s24, 2
      %s26 = scalar_select %p25, 0, %s24
      %s27 = sadd.s32 1, %s18
      %s28 = scalar_select %p25, %s27, %s18
      %p29 = scmp.ge.s32.totalorder %s28, 1
      %s30 = scalar_select %p29, 0, %s28
      %s31 = ssub.s32 %s18, %s30
      %s32 = ssub.s32 %s19, %s26
      %s33 = sor.u32 %s31, %s32
      %p34 = scmp.eq.s32.totalorder %s33, 0
      %s36 = sadd.s32 %s35, 1
      %s37 = scalar_select %p34, %s35, %s36
      %p40 = pneg %p34
      %p41 = scmp.eq.s32.totalorder %s11, 1
      %p42 = por %p40, %p41
      %p43 = scmp.ne.s32.totalorder %s35, %s38
      %p44 = scmp.eq.s32.totalorder %s11, 0
      %p45 = por %p43, %p44
      %p46 = scmp.ne.s32.totalorder %s35, %s38
      %p47 = scmp.eq.s32.totalorder %s16, 1
      %p48 = por %p46, %p47
      %p49 = scmp.ne.s32.totalorder %s38, %s39
      %p50 = scmp.eq.s32.totalorder %s16, 0
      %p51 = por %p49, %p50
      %p52 = scmp.ne.s32.totalorder %s38, %s39
      %p53 = scmp.eq.s32.totalorder %s17, 1
      %p54 = por %p52, %p53
      %p56 = scmp.ne.s32.totalorder %s39, %s55
      %p57 = scmp.eq.s32.totalorder %s17, 0
      %p58 = por %p56, %p57
      %s59 = ssub.s32 %s18, %s30
      %s60 = ssub.s32 %s19, %s26
      %s61 = sor.u32 %s59, %s60
      %p62 = scmp.eq.s32.totalorder %s61, 0
      %s64 = sadd.s32 %s63, 1
      %s65 = scalar_select %p62, %s63, %s64
      %p68 = pneg %p62
      %p69 = scmp.eq.s32.totalorder %s11, 1
      %p70 = por %p68, %p69
      %p71 = scmp.ne.s32.totalorder %s63, %s66
      %p72 = scmp.eq.s32.totalorder %s11, 0
      %p73 = por %p71, %p72
      %p74 = scmp.ne.s32.totalorder %s63, %s66
      %p75 = scmp.eq.s32.totalorder %s16, 1
      %p76 = por %p74, %p75
      %p77 = scmp.ne.s32.totalorder %s66, %s67
      %p78 = scmp.eq.s32.totalorder %s16, 0
      %p79 = por %p77, %p78
      %p80 = scmp.ne.s32.totalorder %s66, %s67
      %p81 = scmp.eq.s32.totalorder %s17, 1
      %p82 = por %p80, %p81
      %p84 = scmp.ne.s32.totalorder %s67, %s83
      %p85 = scmp.eq.s32.totalorder %s17, 0
      %p86 = por %p84, %p85
      %s87 = ssub.s32 %s18, %s30
      %s88 = ssub.s32 %s19, %s26
      %s89 = sor.u32 %s87, %s88
      %p90 = scmp.eq.s32.totalorder %s89, 0
      %s92 = sadd.s32 %s91, 1
      %s93 = scalar_select %p90, %s91, %s92
      %p96 = pneg %p90
      %p97 = scmp.eq.s32.totalorder %s11, 1
      %p98 = por %p96, %p97
      %p99 = scmp.ne.s32.totalorder %s91, %s94
      %p100 = scmp.eq.s32.totalorder %s11, 0
      %p101 = por %p99, %p100
      %p102 = scmp.ne.s32.totalorder %s91, %s94
      %p103 = scmp.eq.s32.totalorder %s16, 1
      %p104 = por %p102, %p103
      %p105 = scmp.ne.s32.totalorder %s94, %s95
      %p106 = scmp.eq.s32.totalorder %s16, 0
      %p107 = por %p105, %p106
      %p108 = scmp.ne.s32.totalorder %s94, %s95
      %p109 = scmp.eq.s32.totalorder %s17, 1
      %p110 = por %p108, %p109
      %p112 = scmp.ne.s32.totalorder %s95, %s111
      %p113 = scmp.eq.s32.totalorder %s17, 0
      %p114 = por %p112, %p113
      %s115 = ssub.s32 %s18, %s30
      %s116 = ssub.s32 %s19, %s26
      %s117 = sor.u32 %s115, %s116
      %p118 = scmp.eq.s32.totalorder %s117, 0
      %s120 = sadd.s32 %s119, 1
      %s121 = scalar_select %p118, %s119, %s120
      %p124 = pneg %p118
      %p125 = scmp.eq.s32.totalorder %s11, 1
      %p126 = por %p124, %p125
      %p127 = scmp.ne.s32.totalorder %s119, %s122
      %p128 = scmp.eq.s32.totalorder %s11, 0
      %p129 = por %p127, %p128
      %p130 = scmp.ne.s32.totalorder %s119, %s122
      %p131 = scmp.eq.s32.totalorder %s16, 1
      %p132 = por %p130, %p131
      %p133 = scmp.ne.s32.totalorder %s122, %s123
      %p134 = scmp.eq.s32.totalorder %s16, 0
      %p135 = por %p133, %p134
      %p136 = scmp.ne.s32.totalorder %s122, %s123
      %p137 = scmp.eq.s32.totalorder %s17, 1
      %p138 = por %p136, %p137
      %p140 = scmp.ne.s32.totalorder %s123, %s139
      %p141 = scmp.eq.s32.totalorder %s17, 0
      %p142 = por %p140, %p141
      %s143 = ssub.s32 %s18, %s30
      %s144 = ssub.s32 %s19, %s26
      %s145 = sor.u32 %s143, %s144
      %p146 = scmp.eq.s32.totalorder %s145, 0
      %s148 = sadd.s32 %s147, 1
      %s149 = scalar_select %p146, %s147, %s148
      %p152 = pneg %p146
      %p153 = scmp.eq.s32.totalorder %s11, 1
      %p154 = por %p152, %p153
      %p155 = scmp.ne.s32.totalorder %s147, %s150
      %p156 = scmp.eq.s32.totalorder %s11, 0
      %p157 = por %p155, %p156
      %p158 = scmp.ne.s32.totalorder %s147, %s150
      %p159 = scmp.eq.s32.totalorder %s16, 1
      %p160 = por %p158, %p159
      %p161 = scmp.ne.s32.totalorder %s150, %s151
      %p162 = scmp.eq.s32.totalorder %s16, 0
      %p163 = por %p161, %p162
      %p164 = scmp.ne.s32.totalorder %s150, %s151
      %p165 = scmp.eq.s32.totalorder %s17, 1
      %p166 = por %p164, %p165
      %p168 = scmp.ne.s32.totalorder %s151, %s167
      %p169 = scmp.eq.s32.totalorder %s17, 0
      %p170 = por %p168, %p169
      %p171 = scmp.le.s32.totalorder 1, %s11
      %p172 = scmp.lt.s32.totalorder %s11, 3
      %p173 = pnand %p171, %p172
      %p174 = pneg %p173
      // Predicated region
      $region9: #{model_forward.1} parent=5 // pred_check
        _
      $region10: #{model_forward.1} parent=5 // pred_check_branch
        %176 = sbr.rel (%p173) target = $region12
      $region11: #{model_forward.1} parent=5 // pred_region
        %s177 = ssub.s32 %s11, 1
      $region12: #{model_forward.1} parent=5 // pred_fallthru
        _
      %p178 = scmp.lt.s32.totalorder %s11, 2
      // Predicated region
      $region13: #{model_forward.1} parent=5 // pred_check
        %p179 = pneg %p178
      $region14: #{model_forward.1} parent=5 // pred_check_branch
        %181 = sbr.rel (%p179) target = $region16
      $region15: #{model_forward.1} parent=5 // pred_region
        // Predicated region
        $region17: #{model_forward.1} parent=15 // pred_check
          %p182 = pneg %p45
        $region18: #{model_forward.1} parent=15 // pred_check_branch
          %184 = sbr.rel (%p182) target = $region20
        $region19: #{model_forward.1} parent=15 // pred_region
          %s185 = sand.u32 %s35, 1
          %s186 = sand.u32 %s35, 1
          %s187 = smul.addr %s186, 8
          %s188 = scalar_lea.vmem [#allocation2], %s187
          %s189 = smul.u32 2, %s18
          %s190 = smul.addr %s189, 2
          %s191 = sadd.s32 %s19, %s190
          %s192 = smul.addr %s191, 4
          %s193 = scalar_lea.vmem %s0, %s192
          // Predicated region
          $region21: #{model_forward.1} parent=19 // pred_check
            _
          $region22: #{model_forward.1} parent=19 // pred_check_branch
            %195 = sbr.rel (0) target = $region24
          $region23: #{model_forward.1} parent=19 // pred_region
            // Predicated region
            $region25: #{model_forward.1} parent=23 // pred_check
              _
            $region26: #{model_forward.1} parent=23 // pred_check_branch
              %197 = sbr.rel target = $region28
            $region27: #{model_forward.1} parent=23 // pred_region
              // Predicated region
              $region40: #{model_forward.1} parent=27 // pred_check
                _
              $region41: #{model_forward.1} parent=27 // pred_check_branch
                %214 = sbr.rel (0) target = $region43
              $region42: #{model_forward.1} parent=27 // pred_region
                loop: start=0, step=1, limit=1
                $region44: #{model_forward.1} parent=42 // loop_pre_header
                  _
                $region45: #{model_forward.1} parent=42 // loop_header
                  %s216 = sphi 0, %s220
                  %p217 = scmp.ge.s32.totalorder %s216, 1
                  %s221 = sphi %s193, %s193
                  %s222 = sphi %s188, %s188
                $region46: #{model_forward.1} parent=42 // loop_header_branch
                  %219 = sbr.rel (%p217) target = $region50
                $region47: #{model_forward.1} parent=42 // loop_body
                  _
                $region48: #{model_forward.1} parent=42 // loop_footer
                  %s220 = sadd.s32 1, %s216
                $region49: #{model_forward.1} parent=42 // loop_footer_branch
                  %215 = sbr.rel target = $region45
                $region50: #{model_forward.1} parent=42 // loop_exit
                  _
                loop: start=0, step=1, limit=1
                $region51: #{model_forward.1} parent=42 // loop_pre_header
                  _
                $region52: #{model_forward.1} parent=42 // loop_header
                  %s225 = sphi 0, %s229
                  %p226 = scmp.ge.s32.totalorder %s225, 1
                  %s230 = sphi %s193, %s193
                  %s231 = sphi %s188, %s188
                $region53: #{model_forward.1} parent=42 // loop_header_branch
                  %228 = sbr.rel (%p226) target = $region57
                $region54: #{model_forward.1} parent=42 // loop_body
                  %v232 = vld [vmem:[%s230] sm:$0xf]
                  %233 = vst [vmem:[%s231] sm:$0xf] %v232
                  %v234 = vld [vmem:[%s230 + $0x8] sm:$0xf]
                  %235 = vst [vmem:[%s231 + $0x4] sm:$0xf] %v234
                $region55: #{model_forward.1} parent=42 // loop_footer
                  %s229 = sadd.s32 1, %s225
                $region56: #{model_forward.1} parent=42 // loop_footer_branch
                  %224 = sbr.rel target = $region52
                $region57: #{model_forward.1} parent=42 // loop_exit
                  _
              $region43: #{model_forward.1} parent=27 // pred_fallthru
                _
            $region28: #{model_forward.1} parent=23 // pred_fallthru
              _
            // Predicated region
            $region29: #{model_forward.1} parent=23 // pred_check
              _
            $region30: #{model_forward.1} parent=23 // pred_check_branch
              %199 = sbr.rel (0) target = $region32
            $region31: #{model_forward.1} parent=23 // pred_region
              loop: start=0, step=1, limit=1
              $region33: #{model_forward.1} parent=31 // loop_pre_header
                _
              $region34: #{model_forward.1} parent=31 // loop_header
                %s202 = sphi 0, %s206
                %p203 = scmp.ge.s32.totalorder %s202, 1
                %s207 = sphi %s193, %s193
                %s208 = sphi %s188, %s188
              $region35: #{model_forward.1} parent=31 // loop_header_branch
                %205 = sbr.rel (%p203) target = $region39
              $region36: #{model_forward.1} parent=31 // loop_body
                %v209 = vld [vmem:[%s207] sm:$0xf]
                %210 = vst [vmem:[%s208] sm:$0xf] %v209
                %v211 = vld [vmem:[%s207 + $0x8] sm:$0xf]
                %212 = vst [vmem:[%s208 + $0x4] sm:$0xf] %v211
              $region37: #{model_forward.1} parent=31 // loop_footer
                %s206 = sadd.s32 1, %s202
              $region38: #{model_forward.1} parent=31 // loop_footer_branch
                %201 = sbr.rel target = $region34
              $region39: #{model_forward.1} parent=31 // loop_exit
                _
            $region32: #{model_forward.1} parent=23 // pred_fallthru
              _
          $region24: #{model_forward.1} parent=19 // pred_fallthru
            _
          %236 = vnop
        $region20: #{model_forward.1} parent=15 // pred_fallthru
          _
      $region16: #{model_forward.1} parent=5 // pred_fallthru
        _
      %p237 = scmp.le.s32.totalorder 1, %s11
      %p238 = scmp.lt.s32.totalorder %s11, 3
      %p239 = pnand %p237, %p238
      %p240 = pneg %p239
      // Predicated region
      $region58: #{model_forward.1} parent=5 // pred_check
        _
      $region59: #{model_forward.1} parent=5 // pred_check_branch
        %242 = sbr.rel (%p239) target = $region61
      $region60: #{model_forward.1} parent=5 // pred_region
        %s243 = ssub.s32 %s11, 1
        %s244 = sand.u32 %s38, 1
        %s245 = sand.u32 %s38, 1
        %s246 = smul.addr %s245, 8
        %s247 = scalar_lea.vmem [#allocation2], %s246
        // Predicated region
        $region62: #{model_forward.1} parent=60 // pred_check
          %p248 = pneg %p51
        $region63: #{model_forward.1} parent=60 // pred_check_branch
          %250 = sbr.rel (%p248) target = $region65
        $region64: #{model_forward.1} parent=60 // pred_region
          _
        $region65: #{model_forward.1} parent=60 // pred_fallthru
          _
        %s251 = sand.u32 %s38, 1
        %s252 = sand.u32 %s38, 1
        %s253 = smul.addr %s252, 8
        %s254 = scalar_lea.vmem [#allocation2], %s253
        %p255 = pneg %p51
        %p256 = pneg %p48
        %p257 = pneg %p79
        %p258 = pneg %p76
        %s259 = sand.u32 %s66, 1
        %s260 = sand.u32 %s66, 1
        %s261 = smul.addr %s260, 8
        %s262 = scalar_lea.vmem [#allocation3], %s261
        %p263 = pneg %p107
        %p264 = pneg %p104
        %p265 = scmp.lt.s32.totalorder %s20, 0
        %s266 = scalar_select %p265, %s20, 0
        %p267 = scmp.lt.s32.totalorder %s21, 1
        %s268 = scalar_select %p267, %s21, 1
        %s269 = smul.addr %s266, 2
        %s270 = sadd.s32 %s268, %s269
        %s271 = smul.addr %s270, 2
        %s272 = scalar_lea.vmem %s2, %s271
        %p273 = pneg %p135
        %p274 = pneg %p132
        %p275 = scmp.lt.s32.totalorder %s20, 0
        %s276 = scalar_select %p275, %s20, 0
        %p277 = scmp.lt.s32.totalorder %s21, 1
        %s278 = scalar_select %p277, %s21, 1
        %s279 = smul.addr %s276, 2
        %s280 = sadd.s32 %s278, %s279
        %s281 = smul.addr %s280, 2
        %s282 = scalar_lea.vmem %s3, %s281
        %p283 = pneg %p163
        %p284 = pneg %p160
        %p285 = scmp.lt.s32.totalorder %s20, 0
        %s286 = scalar_select %p285, %s20, 0
        %p287 = scmp.lt.s32.totalorder %s21, 1
        %s288 = scalar_select %p287, %s21, 1
        %s289 = smul.addr %s286, 2
        %s290 = sadd.s32 %s288, %s289
        %s291 = smul.addr %s290, 2
        %s292 = scalar_lea.vmem %s4, %s291
        %s293 = smul.u32 2, %s20
        %s294 = smul.u32 2, %s20
        %p295 = scmp.lt.s32.totalorder %s20, 0
        %s296 = scalar_select %p295, %s20, 0
        %p297 = scmp.lt.s32.totalorder %s21, 1
        %s298 = scalar_select %p297, %s21, 1
        %s299 = smul.addr %s296, 2
        %s300 = sadd.s32 %s298, %s299
        %s301 = smul.addr %s300, 2
        %s302 = scalar_lea.vmem %s2, %s301
        %p303 = scmp.lt.s32.totalorder %s20, 0
        %s304 = scalar_select %p303, %s20, 0
        %p305 = scmp.lt.s32.totalorder %s21, 1
        %s306 = scalar_select %p305, %s21, 1
        %s307 = smul.addr %s304, 2
        %s308 = sadd.s32 %s306, %s307
        %s309 = smul.addr %s308, 2
        %s310 = scalar_lea.vmem %s3, %s309
        %p311 = scmp.lt.s32.totalorder %s20, 0
        %s312 = scalar_select %p311, %s20, 0
        %p313 = scmp.lt.s32.totalorder %s21, 1
        %s314 = scalar_select %p313, %s21, 1
        %s315 = smul.addr %s312, 2
        %s316 = sadd.s32 %s314, %s315
        %s317 = smul.addr %s316, 2
        %s318 = scalar_lea.vmem %s4, %s317
        %v319 = vld [vmem:[%s247] sm:$0x7]
        %v320 = vld [vmem:[%s247 + $0x4] sm:$0x7]
        %321 = vst [vmem:[%s262] sm:$0x7] %v319
        %322 = vst [vmem:[%s262 + $0x4] sm:$0x7] %v320
        %v325 = vrot.slane %v320, 7
        %vm326 = vcmask 1041409
        %v327 = vsel %vm326, %v325, %v319
        %329 = vst [vmem:[%s302] sm:$0x3] %v327
        %vm330 = vcmask 1042434
        %v331 = vsel %vm330, %v325, %v319
        %333 = vst [vmem:[%s310 - $0x1] sm:$0x6] %v331
        %vm334 = vcmask 1043459
        %v335 = vsel %vm334, %v325, %v319
        %337 = vst [vmem:[%s318 - $0x2] sm:$0xc] %v335
        %s338 = sand.u32 %s66, 1
        %s339 = sand.u32 %s66, 1
        %s340 = smul.addr %s339, 8
        %s341 = scalar_lea.vmem [#allocation3], %s340
        %p342 = scmp.lt.s32.totalorder %s20, 0
        %s343 = scalar_select %p342, %s20, 0
        %p344 = scmp.lt.s32.totalorder %s21, 1
        %s345 = scalar_select %p344, %s21, 1
        %s346 = smul.addr %s343, 2
        %s347 = sadd.s32 %s345, %s346
        %s348 = smul.addr %s347, 2
        %s349 = scalar_lea.vmem %s2, %s348
        %p350 = scmp.lt.s32.totalorder %s20, 0
        %s351 = scalar_select %p350, %s20, 0
        %p352 = scmp.lt.s32.totalorder %s21, 1
        %s353 = scalar_select %p352, %s21, 1
        %s354 = smul.addr %s351, 2
        %s355 = sadd.s32 %s353, %s354
        %s356 = smul.addr %s355, 2
        %s357 = scalar_lea.vmem %s3, %s356
        %p358 = scmp.lt.s32.totalorder %s20, 0
        %s359 = scalar_select %p358, %s20, 0
        %p360 = scmp.lt.s32.totalorder %s21, 1
        %s361 = scalar_select %p360, %s21, 1
        %s362 = smul.addr %s359, 2
        %s363 = sadd.s32 %s361, %s362
        %s364 = smul.addr %s363, 2
        %s365 = scalar_lea.vmem %s4, %s364
        // Predicated region
        $region66: #{model_forward.1} parent=60 // pred_check
          %p366 = pneg %p76
        $region67: #{model_forward.1} parent=60 // pred_check_branch
          %368 = sbr.rel (%p366) target = $region69
        $region68: #{model_forward.1} parent=60 // pred_region
          %s369 = smul.u32 2, %s20
          %s370 = smul.addr %s369, 2
          %s371 = sadd.s32 %s21, %s370
          %s372 = smul.addr %s371, 4
          %s373 = scalar_lea.vmem %s1, %s372
          // Predicated region
          $region70: #{model_forward.1} parent=68 // pred_check
            _
          $region71: #{model_forward.1} parent=68 // pred_check_branch
            %375 = sbr.rel (0) target = $region73
          $region72: #{model_forward.1} parent=68 // pred_region
            // Predicated region
            $region74: #{model_forward.1} parent=72 // pred_check
              _
            $region75: #{model_forward.1} parent=72 // pred_check_branch
              %377 = sbr.rel target = $region77
            $region76: #{model_forward.1} parent=72 // pred_region
              // Predicated region
              $region89: #{model_forward.1} parent=76 // pred_check
                _
              $region90: #{model_forward.1} parent=76 // pred_check_branch
                %394 = sbr.rel (0) target = $region92
              $region91: #{model_forward.1} parent=76 // pred_region
                loop: start=0, step=1, limit=1
                $region93: #{model_forward.1} parent=91 // loop_pre_header
                  _
                $region94: #{model_forward.1} parent=91 // loop_header
                  %s396 = sphi 0, %s400
                  %p397 = scmp.ge.s32.totalorder %s396, 1
                  %s401 = sphi %s341, %s341
                  %s402 = sphi %s373, %s373
                $region95: #{model_forward.1} parent=91 // loop_header_branch
                  %399 = sbr.rel (%p397) target = $region99
                $region96: #{model_forward.1} parent=91 // loop_body
                  _
                $region97: #{model_forward.1} parent=91 // loop_footer
                  %s400 = sadd.s32 1, %s396
                $region98: #{model_forward.1} parent=91 // loop_footer_branch
                  %395 = sbr.rel target = $region94
                $region99: #{model_forward.1} parent=91 // loop_exit
                  _
                loop: start=0, step=1, limit=1
                $region100: #{model_forward.1} parent=91 // loop_pre_header
                  _
                $region101: #{model_forward.1} parent=91 // loop_header
                  %s405 = sphi 0, %s409
                  %p406 = scmp.ge.s32.totalorder %s405, 1
                  %s410 = sphi %s341, %s341
                  %s411 = sphi %s373, %s373
                $region102: #{model_forward.1} parent=91 // loop_header_branch
                  %408 = sbr.rel (%p406) target = $region106
                $region103: #{model_forward.1} parent=91 // loop_body
                  %v412 = vld [vmem:[%s410] sm:$0xf]
                  %413 = vst [vmem:[%s411] sm:$0xf] %v412
                  %v414 = vld [vmem:[%s410 + $0x4] sm:$0xf]
                  %415 = vst [vmem:[%s411 + $0x8] sm:$0xf] %v414
                $region104: #{model_forward.1} parent=91 // loop_footer
                  %s409 = sadd.s32 1, %s405
                $region105: #{model_forward.1} parent=91 // loop_footer_branch
                  %404 = sbr.rel target = $region101
                $region106: #{model_forward.1} parent=91 // loop_exit
                  _
              $region92: #{model_forward.1} parent=76 // pred_fallthru
                _
            $region77: #{model_forward.1} parent=72 // pred_fallthru
              _
            // Predicated region
            $region78: #{model_forward.1} parent=72 // pred_check
              _
            $region79: #{model_forward.1} parent=72 // pred_check_branch
              %379 = sbr.rel (0) target = $region81
            $region80: #{model_forward.1} parent=72 // pred_region
              loop: start=0, step=1, limit=1
              $region82: #{model_forward.1} parent=80 // loop_pre_header
                _
              $region83: #{model_forward.1} parent=80 // loop_header
                %s382 = sphi 0, %s386
                %p383 = scmp.ge.s32.totalorder %s382, 1
                %s387 = sphi %s341, %s341
                %s388 = sphi %s373, %s373
              $region84: #{model_forward.1} parent=80 // loop_header_branch
                %385 = sbr.rel (%p383) target = $region88
              $region85: #{model_forward.1} parent=80 // loop_body
                %v389 = vld [vmem:[%s387] sm:$0xf]
                %390 = vst [vmem:[%s388] sm:$0xf] %v389
                %v391 = vld [vmem:[%s387 + $0x4] sm:$0xf]
                %392 = vst [vmem:[%s388 + $0x8] sm:$0xf] %v391
              $region86: #{model_forward.1} parent=80 // loop_footer
                %s386 = sadd.s32 1, %s382
              $region87: #{model_forward.1} parent=80 // loop_footer_branch
                %381 = sbr.rel target = $region83
              $region88: #{model_forward.1} parent=80 // loop_exit
                _
            $region81: #{model_forward.1} parent=72 // pred_fallthru
              _
          $region73: #{model_forward.1} parent=68 // pred_fallthru
            _
          %416 = vnop
        $region69: #{model_forward.1} parent=60 // pred_fallthru
          _
        // Predicated region
        $region107: #{model_forward.1} parent=60 // pred_check
          %p417 = pneg %p104
        $region108: #{model_forward.1} parent=60 // pred_check_branch
          %419 = sbr.rel (%p417) target = $region110
        $region109: #{model_forward.1} parent=60 // pred_region
          _
        $region110: #{model_forward.1} parent=60 // pred_fallthru
          _
        // Predicated region
        $region111: #{model_forward.1} parent=60 // pred_check
          %p420 = pneg %p132
        $region112: #{model_forward.1} parent=60 // pred_check_branch
          %422 = sbr.rel (%p420) target = $region114
        $region113: #{model_forward.1} parent=60 // pred_region
          _
        $region114: #{model_forward.1} parent=60 // pred_fallthru
          _
        // Predicated region
        $region115: #{model_forward.1} parent=60 // pred_check
          %p423 = pneg %p160
        $region116: #{model_forward.1} parent=60 // pred_check_branch
          %425 = sbr.rel (%p423) target = $region118
        $region117: #{model_forward.1} parent=60 // pred_region
          _
        $region118: #{model_forward.1} parent=60 // pred_fallthru
          _
      $region61: #{model_forward.1} parent=5 // pred_fallthru
        _
      %p426 = scmp.le.s32.totalorder 2, %s11
      // Predicated region
      $region119: #{model_forward.1} parent=5 // pred_check
        %p427 = pneg %p426
      $region120: #{model_forward.1} parent=5 // pred_check_branch
        %429 = sbr.rel (%p427) target = $region122
      $region121: #{model_forward.1} parent=5 // pred_region
        %s430 = ssub.s32 %s11, 2
        // Predicated region
        $region123: #{model_forward.1} parent=121 // pred_check
          %p431 = pneg %p82
        $region124: #{model_forward.1} parent=121 // pred_check_branch
          %433 = sbr.rel (%p431) target = $region126
        $region125: #{model_forward.1} parent=121 // pred_region
          %s434 = sand.u32 %s67, 1
          %s435 = sand.u32 %s67, 1
          %s436 = smul.addr %s435, 8
          %s437 = scalar_lea.vmem [#allocation3], %s436
        $region126: #{model_forward.1} parent=121 // pred_fallthru
          _
        // Predicated region
        $region127: #{model_forward.1} parent=121 // pred_check
          %p438 = pneg %p110
        $region128: #{model_forward.1} parent=121 // pred_check_branch
          %440 = sbr.rel (%p438) target = $region130
        $region129: #{model_forward.1} parent=121 // pred_region
          %p441 = scmp.lt.s32.totalorder %s22, 0
          %s442 = scalar_select %p441, %s22, 0
          %p443 = scmp.lt.s32.totalorder %s23, 1
          %s444 = scalar_select %p443, %s23, 1
          %s445 = smul.addr %s442, 2
          %s446 = sadd.s32 %s444, %s445
          %s447 = smul.addr %s446, 2
          %s448 = scalar_lea.vmem %s2, %s447
        $region130: #{model_forward.1} parent=121 // pred_fallthru
          _
        // Predicated region
        $region131: #{model_forward.1} parent=121 // pred_check
          %p449 = pneg %p138
        $region132: #{model_forward.1} parent=121 // pred_check_branch
          %451 = sbr.rel (%p449) target = $region134
        $region133: #{model_forward.1} parent=121 // pred_region
          %p452 = scmp.lt.s32.totalorder %s22, 0
          %s453 = scalar_select %p452, %s22, 0
          %p454 = scmp.lt.s32.totalorder %s23, 1
          %s455 = scalar_select %p454, %s23, 1
          %s456 = smul.addr %s453, 2
          %s457 = sadd.s32 %s455, %s456
          %s458 = smul.addr %s457, 2
          %s459 = scalar_lea.vmem %s3, %s458
        $region134: #{model_forward.1} parent=121 // pred_fallthru
          _
        // Predicated region
        $region135: #{model_forward.1} parent=121 // pred_check
          %p460 = pneg %p166
        $region136: #{model_forward.1} parent=121 // pred_check_branch
          %462 = sbr.rel (%p460) target = $region138
        $region137: #{model_forward.1} parent=121 // pred_region
          %p463 = scmp.lt.s32.totalorder %s22, 0
          %s464 = scalar_select %p463, %s22, 0
          %p465 = scmp.lt.s32.totalorder %s23, 1
          %s466 = scalar_select %p465, %s23, 1
          %s467 = smul.addr %s464, 2
          %s468 = sadd.s32 %s466, %s467
          %s469 = smul.addr %s468, 2
          %s470 = scalar_lea.vmem %s4, %s469
        $region138: #{model_forward.1} parent=121 // pred_fallthru
          _
      $region122: #{model_forward.1} parent=5 // pred_fallthru
        _
    $region6: #{model_forward.1} parent=1 // loop_footer
      %s15 = sadd.s32 1, %s11
    $region7: #{model_forward.1} parent=1 // loop_footer_branch
      %10 = sbr.rel target = $region3
    $region8: #{model_forward.1} parent=1 // loop_exit
      _

</llo_original>
